<compile_context>
chip_gen: v7x
topology: tpu7x:2x2x1
jax: 0.10.0
libtpu: 0.0.40
codegen_flags: <defaults>
</compile_context>

<pallas_src>
import functools
import math

import jax
import jax.numpy as jnp
from jax.experimental import pallas as pl
from jax.experimental.pallas import tpu as pltpu


def _round_up(v, m):
    return (v + m - 1) // m * m


_SQRT_HALF = 1.0 / math.sqrt(2.0)


def _vmem_capacity_bytes():
    """Physical per-core VMEM (falls back to the v7x worst case if the query fails)."""
    try:
        info = pltpu.get_tpu_info()
        cap = getattr(info, "vmem_capacity_bytes", None)
        if cap:
            return int(cap)
    except Exception:
        pass
    return 64 * 1024 * 1024


def _layer_norm(x_f32, d_in_true, g, b):
    # Padded feature columns hold zeros, so full-width sums give the true-width moments.
    inv_d = 1.0 / float(d_in_true)
    mean = jnp.sum(x_f32, axis=-1, keepdims=True) * inv_d
    mean_sq = jnp.sum(x_f32 * x_f32, axis=-1, keepdims=True) * inv_d
    var = jnp.maximum(mean_sq - mean * mean, 0.0)
    xn = (x_f32 - mean) * jax.lax.rsqrt(var + 1e-5)
    # gamma/beta are zero in padded columns -> xn is exactly 0 there after affine.
    return xn * g + b


def _gelu(h, approx):
    if approx:
        # tanh approximation (EUP path; v5e opt-in).  Not torch's default erf numerics.
        return 0.5 * h * (1.0 + jnp.tanh(0.7978845608028654 * (h + 0.044715 * h * h * h)))
    return 0.5 * h * (1.0 + jax.lax.erf(h * _SQRT_HALF))


# ----------------------------------------------------------------------------------------------
# Kernels
# ----------------------------------------------------------------------------------------------
def _mlp_resident_kernel(d_in_true, approx_gelu,
                         x_ref, g_ref, b_ref, w1_ref, b1_ref, w2_ref, b2_ref, o_ref):
    """Whole MLP per row tile; both weight matrices are VMEM-resident."""
    xn = _layer_norm(x_ref[...].astype(jnp.float32), d_in_true, g_ref[...], b_ref[...])
    h = jnp.dot(xn.astype(jnp.bfloat16), w1_ref[...],
                preferred_element_type=jnp.float32) + b1_ref[...]
    h = _gelu(h, approx_gelu)
    y = jnp.dot(h.astype(jnp.bfloat16), w2_ref[...],
                preferred_element_type=jnp.float32) + b2_ref[...]
    o_ref[...] = y.astype(o_ref.dtype)


def _mlp_ktiled_kernel(d_in_true, approx_gelu,
                       x_ref, g_ref, b_ref, w1_ref, b1_ref, w2_ref, b2_ref, o_ref,
                       xn_ref, acc_ref):
    """Hidden-dim-tiled MLP: weights streamed in K slabs, f32 accumulator in VMEM scratch."""
    k = pl.program_id(1)

    @pl.when(k == 0)
    def _():
        xn = _layer_norm(x_ref[...].astype(jnp.float32), d_in_true, g_ref[...], b_ref[...])
        xn_ref[...] = xn.astype(jnp.bfloat16)
        acc_ref[...] = jnp.zeros_like(acc_ref)

    h = jnp.dot(xn_ref[...], w1_ref[...], preferred_element_type=jnp.float32) + b1_ref[...]
    h = _gelu(h, approx_gelu)
    acc_ref[...] += jnp.dot(h.astype(jnp.bfloat16), w2_ref[...],
                            preferred_element_type=jnp.float32)

    @pl.when(k == pl.num_programs(1) - 1)
    def _():
        o_ref[...] = (acc_ref[...] + b2_ref[...]).astype(o_ref.dtype)


# ----------------------------------------------------------------------------------------------
# Parameter preparation (one-time pad + cast, hoisted out of the forward path)
# ----------------------------------------------------------------------------------------------
def prepare_params(gamma, beta, w1, b1, w2, b2):
    """Pad feature dims to multiples of 128 and cast GEMM weights to bf16 (done once)."""
    d_in, hidden = w1.shape
    d_out = w2.shape[1]
    d_in_p = _round_up(d_in, 128)
    hid_p = _round_up(hidden, 128)
    d_out_p = _round_up(d_out, 128)

    g_p = jnp.pad(gamma.astype(jnp.float32), (0, d_in_p - d_in)).reshape(1, d_in_p)
    bt_p = jnp.pad(beta.astype(jnp.float32), (0, d_in_p - d_in)).reshape(1, d_in_p)
    w1_p = jnp.pad(w1, ((0, d_in_p - d_in), (0, hid_p - hidden))).astype(jnp.bfloat16)
    b1_p = jnp.pad(b1.astype(jnp.float32), (0, hid_p - hidden)).reshape(1, hid_p)
    w2_p = jnp.pad(w2, ((0, hid_p - hidden), (0, d_out_p - d_out))).astype(jnp.bfloat16)
    b2_p = jnp.pad(b2.astype(jnp.float32), (0, d_out_p - d_out)).reshape(1, d_out_p)

    meta = dict(d_in=d_in, hidden=hidden, d_out=d_out,
                d_in_p=d_in_p, hid_p=hid_p, d_out_p=d_out_p)
    return (g_p, bt_p, w1_p, b1_p, w2_p, b2_p), meta


# ----------------------------------------------------------------------------------------------
# Forward wrapper
# ----------------------------------------------------------------------------------------------
@functools.partial(jax.jit, static_argnames=(
    "d_out", "out_dtype", "tile_m", "tile_k", "force_ktiled", "approx_gelu"))
def mlp_forward(x, g_p, bt_p, w1_p, b1_p, w2_p, b2_p, *, d_out,
                out_dtype=None, tile_m=None, tile_k=None,
                force_ktiled=False, approx_gelu=False):
    """x: (..., D_in) unpadded. Padded params from prepare_params(). Returns (..., d_out)."""
    d_in = x.shape[-1]
    d_in_p, hid_p = w1_p.shape
    d_out_p = w2_p.shape[1]
    lead_shape = x.shape[:-1]
    if out_dtype is None:
        out_dtype = x.dtype

    x2d = x.reshape(-1, d_in)
    n = x2d.shape[0]
    x_itemsize = x.dtype.itemsize
    out_itemsize = jnp.dtype(out_dtype).itemsize

    # ---- VMEM budgeting: decide resident vs K-tiled path -------------------------------------
    vmem_cap = _vmem_capacity_bytes()
    budget = max(vmem_cap - 12 * 1024 * 1024, 24 * 1024 * 1024)

    weight_bytes = (w1_p.size + w2_p.size) * 2                      # bf16, single-buffered
    small_bytes = (g_p.size + bt_p.size + b1_p.size + b2_p.size) * 4
    nominal_tm = min(256, _round_up(max(n, 1), 8))
    resident_total = (weight_bytes + small_bytes
                      + 2 * nominal_tm * d_in_p * x_itemsize         # x tile, double-buffered
                      + 2 * nominal_tm * d_out_p * out_itemsize      # out tile, double-buffered
                      + nominal_tm * (d_in_p + hid_p + d_out_p) * 4)  # f32 intermediates
    use_ktiled = force_ktiled or resident_total > budget

    # ---- Row tile: adaptive {128, 256} on the resident path, 128 on the K-tiled path ---------
    if tile_m is None:
        if use_ktiled:
            tile_m = 128
        else:
            w128 = _round_up(max(n, 1), 128) - n
            w256 = _round_up(max(n, 1), 256) - n
            tile_m = 128 if w128 < w256 else 256
    tm = min(tile_m, _round_up(max(n, 1), 8))
    n_p = _round_up(max(n, 1), tm)

    # Pad x only where needed, in its native dtype.
    if n_p != n or d_in_p != d_in:
        x_p = jnp.pad(x2d, ((0, n_p - n), (0, d_in_p - d_in)))
    else:
        x_p = x2d

    stream_bytes = 2 * tm * d_in_p * x_itemsize + 2 * tm * d_out_p * out_itemsize
    const2 = lambda i, k: (0, 0)

    if not use_ktiled:
        # -------------------- resident-weights path (v5e / v6e and small dims) ----------------
        vmem_limit = int(min(vmem_cap - 4 * 1024 * 1024,
                             max(resident_total + 8 * 1024 * 1024, 32 * 1024 * 1024)))
        kernel = functools.partial(_mlp_resident_kernel, d_in, approx_gelu)
        out = pl.pallas_call(
            kernel,
            out_shape=jax.ShapeDtypeStruct((n_p, d_out_p), out_dtype),
            grid_spec=pltpu.PrefetchScalarGridSpec(
                num_scalar_prefetch=0,
                grid=(n_p // tm,),
                in_specs=[
                    pl.BlockSpec((tm, d_in_p), lambda i: (i, 0)),
                    pl.BlockSpec((1, d_in_p), lambda i: (0, 0), pipeline_mode=pl.Buffered(1)),
                    pl.BlockSpec((1, d_in_p), lambda i: (0, 0), pipeline_mode=pl.Buffered(1)),
                    pl.BlockSpec((d_in_p, hid_p), lambda i: (0, 0), pipeline_mode=pl.Buffered(1)),
                    pl.BlockSpec((1, hid_p), lambda i: (0, 0), pipeline_mode=pl.Buffered(1)),
                    pl.BlockSpec((hid_p, d_out_p), lambda i: (0, 0), pipeline_mode=pl.Buffered(1)),
                    pl.BlockSpec((1, d_out_p), lambda i: (0, 0), pipeline_mode=pl.Buffered(1)),
                ],
                out_specs=pl.BlockSpec((tm, d_out_p), lambda i: (i, 0)),
            ),
            compiler_params=pltpu.CompilerParams(
                dimension_semantics=("parallel",),
                vmem_limit_bytes=vmem_limit,
            ),
        )(x_p, g_p, bt_p, w1_p, b1_p, w2_p, b2_p)
    else:
        # -------------------- K-tiled path (v7x / VMEM-constrained dims) ----------------------
        if tile_k is None:
            fixed = (small_bytes + stream_bytes
                     + tm * d_in_p * 2       # bf16 xn scratch
                     + tm * d_out_p * 4      # f32 accumulator
                     + tm * d_in_p * 4)      # f32 LN intermediate headroom
            per_tk = 4 * (d_in_p + d_out_p) + tm * 4 + 8   # double-buffered W1/W2/b1 slabs + f32 h
            avail = max(budget - fixed, per_tk * 128)
            tk = max(128, min(hid_p, (avail // per_tk) // 128 * 128))
        else:
            tk = min(tile_k, hid_p)
        while hid_p % tk != 0:              # hid_p is a multiple of 128, so this terminates
            tk -= 128
        tk = max(tk, 128)

        ktiled_total = (small_bytes + stream_bytes
                        + 2 * (d_in_p * tk + tk * d_out_p) * 2 + 2 * tk * 4
                        + tm * d_in_p * 2 + tm * d_out_p * 4
                        + tm * (d_in_p + tk) * 4)
        vmem_limit = int(min(vmem_cap - 4 * 1024 * 1024,
                             max(ktiled_total + 8 * 1024 * 1024, 32 * 1024 * 1024)))

        kernel = functools.partial(_mlp_ktiled_kernel, d_in, approx_gelu)
        out = pl.pallas_call(
            kernel,
            out_shape=jax.ShapeDtypeStruct((n_p, d_out_p), out_dtype),
            grid_spec=pltpu.PrefetchScalarGridSpec(
                num_scalar_prefetch=0,
                grid=(n_p // tm, hid_p // tk),
                in_specs=[
                    pl.BlockSpec((tm, d_in_p), lambda i, k: (i, 0)),
                    pl.BlockSpec((1, d_in_p), const2, pipeline_mode=pl.Buffered(1)),
                    pl.BlockSpec((1, d_in_p), const2, pipeline_mode=pl.Buffered(1)),
                    pl.BlockSpec((d_in_p, tk), lambda i, k: (0, k)),
                    pl.BlockSpec((1, tk), lambda i, k: (0, k)),
                    pl.BlockSpec((tk, d_out_p), lambda i, k: (k, 0)),
                    pl.BlockSpec((1, d_out_p), const2, pipeline_mode=pl.Buffered(1)),
                ],
                out_specs=pl.BlockSpec((tm, d_out_p), lambda i, k: (i, 0)),
                scratch_shapes=[
                    pltpu.VMEM((tm, d_in_p), jnp.bfloat16),   # cached LayerNorm output
                    pltpu.VMEM((tm, d_out_p), jnp.float32),   # f32 accumulator
                ],
            ),
            compiler_params=pltpu.CompilerParams(
                dimension_semantics=("parallel", "arbitrary"),
                vmem_limit_bytes=vmem_limit,
            ),
        )(x_p, g_p, bt_p, w1_p, b1_p, w2_p, b2_p)

    out = out[:n, :d_out]
    return out.reshape(*lead_shape, d_out)


# ----------------------------------------------------------------------------------------------
# Synthetic params & plain-JAX reference (matches the torch module's forward)
# ----------------------------------------------------------------------------------------------
def init_params(key, image_embed_dim, llm_embed_dim, dtype=jnp.float32):
    d_in = image_embed_dim * 4
    k1, k2, k3, k4, k5 = jax.random.split(key, 5)
    gamma = jnp.ones((d_in,), dtype) + 0.01 * jax.random.normal(k5, (d_in,), dtype)
    beta = jnp.zeros((d_in,), dtype)
    lim1 = 1.0 / math.sqrt(d_in)
    w1 = jax.random.uniform(k1, (d_in, llm_embed_dim), dtype, -lim1, lim1)   # (in, out)
    b1 = jax.random.uniform(k2, (llm_embed_dim,), dtype, -lim1, lim1)
    lim2 = 1.0 / math.sqrt(llm_embed_dim)
    w2 = jax.random.uniform(k3, (llm_embed_dim, llm_embed_dim), dtype, -lim2, lim2)
    b2 = jax.random.uniform(k4, (llm_embed_dim,), dtype, -lim2, lim2)
    return gamma, beta, w1, b1, w2, b2


def reference_forward(x, gamma, beta, w1, b1, w2, b2):
    mean = jnp.mean(x, axis=-1, keepdims=True)
    var = jnp.mean((x - mean) ** 2, axis=-1, keepdims=True)
    xn = (x - mean) / jnp.sqrt(var + 1e-5) * gamma + beta
    h = xn @ w1 + b1
    h = 0.5 * h * (1.0 + jax.lax.erf(h / math.sqrt(2.0)))
    return h @ w2 + b2


if __name__ == "__main__":
    image_embed_dim = 16          # -> D_in = 64
    llm_embed_dim = 32            # hidden = out = 32
    batch, seq = 2, 8             # N = 16 rows

    key = jax.random.PRNGKey(0)
    kx, kp = jax.random.split(key)
    x = jax.random.normal(kx, (batch, seq, image_embed_dim * 4), jnp.float32)

    # --- resident-weights path (default), f32 output ------------------------------------------
    raw = init_params(kp, image_embed_dim, llm_embed_dim)
    padded, _ = prepare_params(*raw)
    out = mlp_forward(x, *padded, d_out=llm_embed_dim)
    out = jax.block_until_ready(out)
    ref = reference_forward(x, *raw)
    assert out.shape == (batch, seq, llm_embed_dim)
    # bf16 MXU operands vs the f32 reference -> ~1e-2 relative tolerance.
    assert jnp.allclose(out, ref, atol=2e-2, rtol=2e-2), "resident path mismatch vs reference"

    # --- K-tiled (v7x / VMEM-constrained) path with 2 reduction steps and bf16 output ---------
    llm2 = 256
    raw2 = init_params(jax.random.PRNGKey(1), image_embed_dim, llm2)
    padded2, _ = prepare_params(*raw2)
    out2 = mlp_forward(x, *padded2, d_out=llm2, out_dtype=jnp.bfloat16,
                       force_ktiled=True, tile_k=128)
    out2 = jax.block_until_ready(out2)
    ref2 = reference_forward(x, *raw2)
    assert out2.shape == (batch, seq, llm2)
    assert jnp.allclose(out2.astype(jnp.float32), ref2, atol=3e-2, rtol=3e-2), \
        "K-tiled path mismatch vs reference"

    print("KERNEL_OK")
</pallas_src>

<mosaic_0001>
module attributes {stable_mosaic.version = 11 : i64} {
  func.func @_mlp_resident_kernel(%arg0: i32, %arg1: memref<16x128xf32, #tpu.memory_space<vmem>>, %arg2: memref<1x128xf32, #tpu.memory_space<vmem>>, %arg3: memref<1x128xf32, #tpu.memory_space<vmem>>, %arg4: memref<128x128xbf16, #tpu.memory_space<vmem>>, %arg5: memref<1x128xf32, #tpu.memory_space<vmem>>, %arg6: memref<128x128xbf16, #tpu.memory_space<vmem>>, %arg7: memref<1x128xf32, #tpu.memory_space<vmem>>, %arg8: memref<16x128xf32, #tpu.memory_space<vmem>>) attributes {dimension_semantics = [#tpu.dimension_semantics<parallel>], iteration_bounds = array<i64: 1>, scalar_prefetch = 0 : i64, scratch_operands = 0 : i64, tpu.core_type = #tpu.core_type<tc>, window_params = [{transform_indices = @transform_0, window_bounds = array<i64: 16, 128>}, {pipeline_mode = #tpu.pipeline_mode<synchronous>, transform_indices = @transform_1, window_bounds = array<i64: 1, 128>}, {pipeline_mode = #tpu.pipeline_mode<synchronous>, transform_indices = @transform_2, window_bounds = array<i64: 1, 128>}, {pipeline_mode = #tpu.pipeline_mode<synchronous>, transform_indices = @transform_3, window_bounds = array<i64: 128, 128>}, {pipeline_mode = #tpu.pipeline_mode<synchronous>, transform_indices = @transform_4, window_bounds = array<i64: 1, 128>}, {pipeline_mode = #tpu.pipeline_mode<synchronous>, transform_indices = @transform_5, window_bounds = array<i64: 128, 128>}, {pipeline_mode = #tpu.pipeline_mode<synchronous>, transform_indices = @transform_6, window_bounds = array<i64: 1, 128>}, {transform_indices = @transform_7, window_bounds = array<i64: 16, 128>}]} {
    %c0 = arith.constant 0 : index
    %c0_0 = arith.constant 0 : index
    %0 = vector.load %arg1[%c0, %c0_0] : memref<16x128xf32, #tpu.memory_space<vmem>>, vector<16x128xf32>
    %c0_1 = arith.constant 0 : index
    %c0_2 = arith.constant 0 : index
    %1 = vector.load %arg2[%c0_1, %c0_2] : memref<1x128xf32, #tpu.memory_space<vmem>>, vector<1x128xf32>
    %c0_3 = arith.constant 0 : index
    %c0_4 = arith.constant 0 : index
    %2 = vector.load %arg3[%c0_3, %c0_4] : memref<1x128xf32, #tpu.memory_space<vmem>>, vector<1x128xf32>
    %cst = arith.constant dense<0.000000e+00> : vector<16xf32>
    %3 = vector.multi_reduction <add>, %0, %cst [1] : vector<16x128xf32> to vector<16xf32>
    %4 = vector.shape_cast %3 : vector<16xf32> to vector<16x1xf32>
    %cst_5 = arith.constant 1.562500e-02 : f32
    %5 = vector.broadcast %cst_5 : f32 to vector<16x1xf32>
    %6 = arith.mulf %4, %5 : vector<16x1xf32>
    %7 = arith.mulf %0, %0 : vector<16x128xf32>
    %cst_6 = arith.constant dense<0.000000e+00> : vector<16xf32>
    %8 = vector.multi_reduction <add>, %7, %cst_6 [1] : vector<16x128xf32> to vector<16xf32>
    %9 = vector.shape_cast %8 : vector<16xf32> to vector<16x1xf32>
    %cst_7 = arith.constant 1.562500e-02 : f32
    %10 = vector.broadcast %cst_7 : f32 to vector<16x1xf32>
    %11 = arith.mulf %9, %10 : vector<16x1xf32>
    %12 = arith.mulf %6, %6 : vector<16x1xf32>
    %13 = arith.subf %11, %12 : vector<16x1xf32>
    %cst_8 = arith.constant 0.000000e+00 : f32
    %14 = vector.broadcast %cst_8 : f32 to vector<16x1xf32>
    %15 = arith.maximumf %13, %14 : vector<16x1xf32>
    %16 = vector.broadcast %6 : vector<16x1xf32> to vector<16x128xf32>
    %17 = arith.subf %0, %16 : vector<16x128xf32>
    %cst_9 = arith.constant 9.99999974E-6 : f32
    %18 = vector.broadcast %cst_9 : f32 to vector<16x1xf32>
    %19 = arith.addf %15, %18 : vector<16x1xf32>
    %20 = math.rsqrt %19 : vector<16x1xf32>
    %21 = vector.broadcast %20 : vector<16x1xf32> to vector<16x128xf32>
    %22 = arith.mulf %17, %21 : vector<16x128xf32>
    %23 = vector.broadcast %1 : vector<1x128xf32> to vector<16x128xf32>
    %24 = arith.mulf %22, %23 : vector<16x128xf32>
    %25 = vector.broadcast %2 : vector<1x128xf32> to vector<16x128xf32>
    %26 = arith.addf %24, %25 : vector<16x128xf32>
    %27 = arith.truncf %26 : vector<16x128xf32> to vector<16x128xbf16>
    %c0_10 = arith.constant 0 : index
    %c0_11 = arith.constant 0 : index
    %28 = vector.load %arg4[%c0_10, %c0_11] : memref<128x128xbf16, #tpu.memory_space<vmem>>, vector<128x128xbf16>
    %cst_12 = arith.constant dense<0.000000e+00> : vector<16x128xf32>
    %29 = tpu.matmul %27, %28, %cst_12 {dimension_numbers = #tpu.dot_dimension_numbers<[1], [0], [0], [1], [0, 0, 1, 1], [], []>} : vector<16x128xbf16>, vector<128x128xbf16>, vector<16x128xf32> -> vector<16x128xf32>
    %c0_13 = arith.constant 0 : index
    %c0_14 = arith.constant 0 : index
    %30 = vector.load %arg5[%c0_13, %c0_14] : memref<1x128xf32, #tpu.memory_space<vmem>>, vector<1x128xf32>
    %31 = vector.broadcast %30 : vector<1x128xf32> to vector<16x128xf32>
    %32 = arith.addf %29, %31 : vector<16x128xf32>
    %cst_15 = arith.constant 5.000000e-01 : f32
    %33 = vector.broadcast %cst_15 : f32 to vector<16x128xf32>
    %34 = arith.mulf %33, %32 : vector<16x128xf32>
    %cst_16 = arith.constant 0.707106769 : f32
    %35 = vector.broadcast %cst_16 : f32 to vector<16x128xf32>
    %36 = arith.mulf %32, %35 : vector<16x128xf32>
    %37 = math.erf %36 : vector<16x128xf32>
    %cst_17 = arith.constant 1.000000e+00 : f32
    %38 = vector.broadcast %cst_17 : f32 to vector<16x128xf32>
    %39 = arith.addf %38, %37 : vector<16x128xf32>
    %40 = arith.mulf %34, %39 : vector<16x128xf32>
    %41 = arith.truncf %40 : vector<16x128xf32> to vector<16x128xbf16>
    %c0_18 = arith.constant 0 : index
    %c0_19 = arith.constant 0 : index
    %42 = vector.load %arg6[%c0_18, %c0_19] : memref<128x128xbf16, #tpu.memory_space<vmem>>, vector<128x128xbf16>
    %cst_20 = arith.constant dense<0.000000e+00> : vector<16x128xf32>
    %43 = tpu.matmul %41, %42, %cst_20 {dimension_numbers = #tpu.dot_dimension_numbers<[1], [0], [0], [1], [0, 0, 1, 1], [], []>} : vector<16x128xbf16>, vector<128x128xbf16>, vector<16x128xf32> -> vector<16x128xf32>
    %c0_21 = arith.constant 0 : index
    %c0_22 = arith.constant 0 : index
    %44 = vector.load %arg7[%c0_21, %c0_22] : memref<1x128xf32, #tpu.memory_space<vmem>>, vector<1x128xf32>
    %45 = vector.broadcast %44 : vector<1x128xf32> to vector<16x128xf32>
    %46 = arith.addf %43, %45 : vector<16x128xf32>
    %c0_23 = arith.constant 0 : index
    %c0_24 = arith.constant 0 : index
    %47 = vector.load %arg8[%c0_23, %c0_24] : memref<16x128xf32, #tpu.memory_space<vmem>>, vector<16x128xf32>
    tpu.vector_store %arg8[%c0_23, %c0_24], %46 {strides = array<i32>} : memref<16x128xf32, #tpu.memory_space<vmem>>, vector<16x128xf32>,
    return
  }
  func.func @transform_0(%arg0: i32) -> (i32, i32) {
    %c0_i32 = arith.constant 0 : i32
    %c0_i32_0 = arith.constant 0 : i32
    return %arg0, %c0_i32 : i32, i32
  }
  func.func @transform_1(%arg0: i32) -> (i32, i32) {
    %c0_i32 = arith.constant 0 : i32
    %c0_i32_0 = arith.constant 0 : i32
    %c0_i32_1 = arith.constant 0 : i32
    return %c0_i32, %c0_i32_0 : i32, i32
  }
  func.func @transform_2(%arg0: i32) -> (i32, i32) {
    %c0_i32 = arith.constant 0 : i32
    %c0_i32_0 = arith.constant 0 : i32
    %c0_i32_1 = arith.constant 0 : i32
    return %c0_i32, %c0_i32_0 : i32, i32
  }
  func.func @transform_3(%arg0: i32) -> (i32, i32) {
    %c0_i32 = arith.constant 0 : i32
    %c0_i32_0 = arith.constant 0 : i32
    %c0_i32_1 = arith.constant 0 : i32
    return %c0_i32, %c0_i32_0 : i32, i32
  }
  func.func @transform_4(%arg0: i32) -> (i32, i32) {
    %c0_i32 = arith.constant 0 : i32
    %c0_i32_0 = arith.constant 0 : i32
    %c0_i32_1 = arith.constant 0 : i32
    return %c0_i32, %c0_i32_0 : i32, i32
  }
  func.func @transform_5(%arg0: i32) -> (i32, i32) {
    %c0_i32 = arith.constant 0 : i32
    %c0_i32_0 = arith.constant 0 : i32
    %c0_i32_1 = arith.constant 0 : i32
    return %c0_i32, %c0_i32_0 : i32, i32
  }
  func.func @transform_6(%arg0: i32) -> (i32, i32) {
    %c0_i32 = arith.constant 0 : i32
    %c0_i32_0 = arith.constant 0 : i32
    %c0_i32_1 = arith.constant 0 : i32
    return %c0_i32, %c0_i32_0 : i32, i32
  }
  func.func @transform_7(%arg0: i32) -> (i32, i32) {
    %c0_i32 = arith.constant 0 : i32
    %c0_i32_0 = arith.constant 0 : i32
    return %arg0, %c0_i32 : i32, i32
  }
}

</mosaic_0001>

<llo_original>
// kernel: mlp_forward.1
$region0: #{mlp_forward.1}
  #allocation0 [shape = 'u32[]', space=smem, size = 0x4, offset = 0x4, fixed_abs, tag = 'smem constant byte address 0x4 - core index']
  #allocation1 [shape = 'u32[144,128]{1,0:T(1,128)}', space=vmem, size = 0x12000, scoped, tag = 'internal scratch']
  %s0 = inlined_call_operand.vmem [shape: f32[16,128], index: 0, kind: input, shape index: {}]
  %s1 = inlined_call_operand.vmem [shape: f32[1,128], index: 1, kind: input, shape index: {}]
  %s2 = inlined_call_operand.vmem [shape: f32[1,128], index: 2, kind: input, shape index: {}]
  %s3 = inlined_call_operand.hbm [shape: bf16[128,128], index: 3, kind: input, shape index: {}]
  %s4 = inlined_call_operand.vmem [shape: f32[1,128], index: 4, kind: input, shape index: {}]
  %s5 = inlined_call_operand.hbm [shape: bf16[128,128], index: 5, kind: input, shape index: {}]
  %s6 = inlined_call_operand.vmem [shape: f32[1,128], index: 6, kind: input, shape index: {}]
  %s7 = inlined_call_operand.vmem [shape: f32[16,128], index: 7, kind: output, shape index: {}]
  %s8 = sld [smem:[#allocation0]]
  $region46: #{mlp_forward.1} parent=0
    _
  %s10 = ssub.s32 1, %s8
  %s11 = scalar_select 0, %s10, %s8
  $region1: #{mlp_forward.1} parent=0
    #allocation2 [shape = 'u8[32768]{0}', space=vmem, size = 0x8000, scoped, tag = 'input window, operand 3, single buffered']
    #allocation3 [shape = 's32[1]{0}', space=sflag, size = 0x4, scoped, tag = 'scoped memory for mlp_forward.1']
    #allocation4 [shape = 'u8[32768]{0}', space=vmem, size = 0x8000, scoped, tag = 'input window, operand 5, single buffered']
    #allocation5 [shape = 's32[1]{0}', space=sflag, size = 0x4, scoped, tag = 'scoped memory for mlp_forward.1']
    %12 = vsyncpa [#allocation3], 0
    %13 = vsyncpa [#allocation5], 0
    // Predicated region
    $region2: #{mlp_forward.1} parent=1 // pred_check
      _
    $region3: #{mlp_forward.1} parent=1 // pred_check_branch
      %15 = sbr.rel (0) target = $region5
    $region4: #{mlp_forward.1} parent=1 // pred_region
      _
    $region5: #{mlp_forward.1} parent=1 // pred_fallthru
      _
    // Predicated region
    $region6: #{mlp_forward.1} parent=1 // pred_check
      _
    $region7: #{mlp_forward.1} parent=1 // pred_check_branch
      %17 = sbr.rel (0) target = $region9
    $region8: #{mlp_forward.1} parent=1 // pred_region
      _
    $region9: #{mlp_forward.1} parent=1 // pred_fallthru
      _
    // Predicated region
    $region10: #{mlp_forward.1} parent=1 // pred_check
      _
    $region11: #{mlp_forward.1} parent=1 // pred_check_branch
      %19 = sbr.rel (0) target = $region13
    $region12: #{mlp_forward.1} parent=1 // pred_region
      _
    $region13: #{mlp_forward.1} parent=1 // pred_fallthru
      _
    // Predicated region
    $region14: #{mlp_forward.1} parent=1 // pred_check
      _
    $region15: #{mlp_forward.1} parent=1 // pred_check_branch
      %21 = sbr.rel (0) target = $region17
    $region16: #{mlp_forward.1} parent=1 // pred_region
      %s23 = ssub.s32 1024, 1024
      %24 = vsyncadd [#allocation3], %s23
      %s25 = sshll.u32 [#allocation2], 4
      %s26 = int_to_ptr.vmem [resolvable:$true] %s25
      %31 = dma.hbm_to_vmem [thread:$0]  %s3, 1024, %s26, [#allocation3], 64, 64, 4
    $region17: #{mlp_forward.1} parent=1 // pred_fallthru
      _
    // Predicated region
    $region18: #{mlp_forward.1} parent=1 // pred_check
      _
    $region19: #{mlp_forward.1} parent=1 // pred_check_branch
      %33 = sbr.rel (0) target = $region21
    $region20: #{mlp_forward.1} parent=1 // pred_region
      _
    $region21: #{mlp_forward.1} parent=1 // pred_fallthru
      _
    // Predicated region
    $region22: #{mlp_forward.1} parent=1 // pred_check
      _
    $region23: #{mlp_forward.1} parent=1 // pred_check_branch
      %35 = sbr.rel (0) target = $region25
    $region24: #{mlp_forward.1} parent=1 // pred_region
      %s37 = ssub.s32 1024, 1024
      %38 = vsyncadd [#allocation5], %s37
      %s39 = sshll.u32 [#allocation4], 4
      %s40 = int_to_ptr.vmem [resolvable:$true] %s39
      %45 = dma.hbm_to_vmem [thread:$0]  %s5, 1024, %s40, [#allocation5], 64, 64, 4
    $region25: #{mlp_forward.1} parent=1 // pred_fallthru
      _
    // Predicated region
    $region26: #{mlp_forward.1} parent=1 // pred_check
      _
    $region27: #{mlp_forward.1} parent=1 // pred_check_branch
      %47 = sbr.rel (0) target = $region29
    $region28: #{mlp_forward.1} parent=1 // pred_region
      _
    $region29: #{mlp_forward.1} parent=1 // pred_fallthru
      _
    // Predicated region
    $region30: #{mlp_forward.1} parent=1 // pred_check
      _
    $region31: #{mlp_forward.1} parent=1 // pred_check_branch
      %49 = sbr.rel (0) target = $region33
    $region32: #{mlp_forward.1} parent=1 // pred_region
      %50 = dma.done [#allocation3], 1024
    $region33: #{mlp_forward.1} parent=1 // pred_fallthru
      _
    // Predicated region
    $region34: #{mlp_forward.1} parent=1 // pred_check
      _
    $region35: #{mlp_forward.1} parent=1 // pred_check_branch
      %52 = sbr.rel (0) target = $region37
    $region36: #{mlp_forward.1} parent=1 // pred_region
      %53 = dma.done [#allocation5], 1024
    $region37: #{mlp_forward.1} parent=1 // pred_fallthru
      _
    %v55 = vld [vmem:[%s0] sm:$0xff]
    %v56 = vld [vmem:[%s0 + $0x8] sm:$0xff]
    %v57 = vld [vmem:[%s1] sm:$0x1]
    %v58 = vld [vmem:[%s2] sm:$0x1]
    %59 = vadd.xlane.f32.xlu0 %v55
    %v60 = vpop.xlane.xlu0 %59
    %61 = vadd.xlane.f32.xlu0 %v56
    %v62 = vpop.xlane.xlu0 %61
    %v63 = vmul.f32 %v60, 0.015625
    %v64 = vmul.f32 %v62, 0.015625
    %v65 = vmul.f32 %v55, %v55
    %v66 = vmul.f32 %v56, %v56
    %67 = vadd.xlane.f32.xlu0 %v65
    %v68 = vpop.xlane.xlu0 %67
    %69 = vadd.xlane.f32.xlu0 %v66
    %v70 = vpop.xlane.xlu0 %69
    %v71 = vmul.f32 %v68, 0.015625
    %v72 = vmul.f32 %v70, 0.015625
    %v73 = vmul.f32 %v63, %v63
    %v74 = vmul.f32 %v64, %v64
    %v75 = vsub.f32 %v71, %v73
    %v76 = vsub.f32 %v72, %v74
    %v77 = vmax.f32 %v75, 0.0
    %v78 = vmax.f32 %v76, 0.0
    %v79 = vsub.f32 %v55, %v63
    %v80 = vsub.f32 %v56, %v64
    %v81 = vadd.f32 %v77, 1e-05
    %v82 = vadd.f32 %v78, 1e-05
    %v83 = vrsqrt.pop %v81
    %v84 = vrsqrt.pop %v82
    %v85 = vmul.f32 %v79, %v83
    %v86 = vmul.f32 %v80, %v84
    %v88 = vlaneseq
    %v89 = vshrl.u32 %v88, 7
    %v90 = vsub.s32 0, %v89
    %v91 = vrot.slane %v57, %v90
    %v93 = vmul.f32 %v85, %v91
    %v94 = vmul.f32 %v86, %v91
    %v96 = vlaneseq
    %v97 = vshrl.u32 %v96, 7
    %v98 = vsub.s32 0, %v97
    %v99 = vrot.slane %v58, %v98
    %v101 = vadd.f32 %v93, %v99
    %v102 = vadd.f32 %v94, %v99
    %v103 = vpack.c.bf16 %v102, %v101
    %v104 = vld [vmem:[#allocation2] sm:$0xf]
    %v105 = vld [vmem:[#allocation2 + $0x4] sm:$0xf]
    %v106 = vld [vmem:[#allocation2 + $0x8] sm:$0xf]
    %v107 = vld [vmem:[#allocation2 + $0xc] sm:$0xf]
    %v108 = vld [vmem:[#allocation2 + $0x10] sm:$0xf]
    %v109 = vld [vmem:[#allocation2 + $0x14] sm:$0xf]
    %v110 = vld [vmem:[#allocation2 + $0x18] sm:$0xf]
    %v111 = vld [vmem:[#allocation2 + $0x1c] sm:$0xf]
    %v112 = vld [vmem:[#allocation2 + $0x20] sm:$0xf]
    %v113 = vld [vmem:[#allocation2 + $0x24] sm:$0xf]
    %v114 = vld [vmem:[#allocation2 + $0x28] sm:$0xf]
    %v115 = vld [vmem:[#allocation2 + $0x2c] sm:$0xf]
    %v116 = vld [vmem:[#allocation2 + $0x30] sm:$0xf]
    %v117 = vld [vmem:[#allocation2 + $0x34] sm:$0xf]
    %v118 = vld [vmem:[#allocation2 + $0x38] sm:$0xf]
    %v119 = vld [vmem:[#allocation2 + $0x3c] sm:$0xf]
    %v120 = vld [vmem:[%s4] sm:$0x1]
    %v122 = vlaneseq
    %v123 = vshrl.u32 %v122, 7
    %v124 = vsub.s32 0, %v123
    %v125 = vrot.slane %v120, %v124
    %v143 = vunpack.c.l.b16 %v104
    %v144 = vunpack.c.l.b16 %v105
    %v145 = vunpack.c.l.b16 %v106
    %v146 = vunpack.c.l.b16 %v107
    %v147 = vunpack.c.l.b16 %v108
    %v148 = vunpack.c.l.b16 %v109
    %v149 = vunpack.c.l.b16 %v110
    %v150 = vunpack.c.l.b16 %v111
    %v151 = vunpack.c.l.b16 %v112
    %v152 = vunpack.c.l.b16 %v113
    %v153 = vunpack.c.l.b16 %v114
    %v154 = vunpack.c.l.b16 %v115
    %v155 = vunpack.c.l.b16 %v116
    %v156 = vunpack.c.l.b16 %v117
    %v157 = vunpack.c.l.b16 %v118
    %v158 = vunpack.c.l.b16 %v119
    %v159 = vpack.c.b16 %v144, %v143
    %v160 = vpack.c.b16 %v146, %v145
    %v161 = vpack.c.b16 %v148, %v147
    %v162 = vpack.c.b16 %v150, %v149
    %v163 = vpack.c.b16 %v152, %v151
    %v164 = vpack.c.b16 %v154, %v153
    %v165 = vpack.c.b16 %v156, %v155
    %v166 = vpack.c.b16 %v158, %v157
    %175 = vmatprep.subr.bf16.mxu0 0
    %176 = vmatpush1.bf16.msra.mxu0 %v159
    %177 = vmatprep.subr.bf16.mxu0 0
    %178 = vmatpush1.bf16.msra.mxu0 %v160
    %179 = vmatprep.subr.bf16.mxu0 0
    %180 = vmatpush1.bf16.msra.mxu0 %v161
    %181 = vmatprep.subr.bf16.mxu0 0
    %182 = vmatpush1.bf16.msra.mxu0 %v162
    %183 = vmatprep.subr.bf16.mxu0 0
    %184 = vmatpush1.bf16.msra.mxu0 %v163
    %185 = vmatprep.subr.bf16.mxu0 0
    %186 = vmatpush1.bf16.msra.mxu0 %v164
    %187 = vmatprep.subr.bf16.mxu0 0
    %188 = vmatpush1.bf16.msra.mxu0 %v165
    %189 = vmatprep.subr.bf16.mxu0 0
    %190 = vmatpush1.bf16.msra.mxu0 %v166
    %191 = vmatprep.subr.bf16.mxu0 0
    %192 = vmatpush1.bf16.msra.mxu0 0
    %193 = vmatprep.subr.bf16.mxu0 0
    %194 = vmatpush1.bf16.msra.mxu0 0
    %195 = vmatprep.subr.bf16.mxu0 0
    %196 = vmatpush1.bf16.msra.mxu0 0
    %197 = vmatprep.subr.bf16.mxu0 0
    %198 = vmatpush1.bf16.msra.mxu0 0
    %199 = vmatprep.subr.bf16.mxu0 0
    %200 = vmatpush1.bf16.msra.mxu0 0
    %201 = vmatprep.subr.bf16.mxu0 0
    %202 = vmatpush1.bf16.msra.mxu0 0
    %203 = vmatprep.subr.bf16.mxu0 0
    %204 = vmatpush1.bf16.msra.mxu0 0
    %205 = vmatprep.subr.bf16.mxu0 0
    %206 = vmatpush1.bf16.msra.mxu0 0
    %207 = vmatprep.mubr.bf16.mxu0 0
    %208 = vmatmul.mubr.bf16.gmra.mrb[0].mxu0 %v103
    %v209 = vpop.f32.mrb[0].mxu0
    %v210 = vadd.f32 %v125, %v209
    %v211 = vpop.f32.mrb[0].mxu0
    %v212 = vpop.f32.mrb[0].mxu0
    %v213 = vadd.f32 %v125, %v212
    %v214 = vpop.f32.mrb[0].mxu0
    %215 = vdwg.mxu0
    %v216 = vmul.f32 %v210, 0.5
    %v217 = vmul.f32 %v213, 0.5
    %v218 = vmul.f32 %v210, 0.70710677
    %v219 = vmul.f32 %v213, 0.70710677
    %v220 = verf.f32.pop %v218
    %v221 = verf.f32.pop %v219
    %v222 = vadd.f32 %v220, 1.0
    %v223 = vadd.f32 %v221, 1.0
    %v224 = vmul.f32 %v216, %v222
    %v225 = vmul.f32 %v217, %v223
    %v226 = vpack.c.bf16 %v225, %v224
    %v227 = vld [vmem:[#allocation4] sm:$0xf]
    %v228 = vld [vmem:[#allocation4 + $0x4] sm:$0xf]
    %v229 = vld [vmem:[#allocation4 + $0x8] sm:$0xf]
    %v230 = vld [vmem:[#allocation4 + $0xc] sm:$0xf]
    %v231 = vld [vmem:[#allocation4 + $0x10] sm:$0xf]
    %v232 = vld [vmem:[#allocation4 + $0x14] sm:$0xf]
    %v233 = vld [vmem:[#allocation4 + $0x18] sm:$0xf]
    %v234 = vld [vmem:[#allocation4 + $0x1c] sm:$0xf]
    %v235 = vld [vmem:[#allocation4 + $0x20] sm:$0xf]
    %v236 = vld [vmem:[#allocation4 + $0x24] sm:$0xf]
    %v237 = vld [vmem:[#allocation4 + $0x28] sm:$0xf]
    %v238 = vld [vmem:[#allocation4 + $0x2c] sm:$0xf]
    %v239 = vld [vmem:[#allocation4 + $0x30] sm:$0xf]
    %v240 = vld [vmem:[#allocation4 + $0x34] sm:$0xf]
    %v241 = vld [vmem:[#allocation4 + $0x38] sm:$0xf]
    %v242 = vld [vmem:[#allocation4 + $0x3c] sm:$0xf]
    %v243 = vld [vmem:[%s6] sm:$0x1]
    %v245 = vlaneseq
    %v246 = vshrl.u32 %v245, 7
    %v247 = vsub.s32 0, %v246
    %v248 = vrot.slane %v243, %v247
    %v266 = vunpack.c.l.b16 %v227
    %v267 = vunpack.c.l.b16 %v228
    %v268 = vunpack.c.l.b16 %v229
    %v269 = vunpack.c.l.b16 %v230
    %v270 = vunpack.c.l.b16 %v231
    %v271 = vunpack.c.l.b16 %v232
    %v272 = vunpack.c.l.b16 %v233
    %v273 = vunpack.c.l.b16 %v234
    %v274 = vunpack.c.l.b16 %v235
    %v275 = vunpack.c.l.b16 %v236
    %v276 = vunpack.c.l.b16 %v237
    %v277 = vunpack.c.l.b16 %v238
    %v278 = vunpack.c.l.b16 %v239
    %v279 = vunpack.c.l.b16 %v240
    %v280 = vunpack.c.l.b16 %v241
    %v281 = vunpack.c.l.b16 %v242
    %v282 = vpack.c.b16 %v267, %v266
    %v283 = vpack.c.b16 %v269, %v268
    %v284 = vpack.c.b16 %v271, %v270
    %v285 = vpack.c.b16 %v273, %v272
    %v286 = vpack.c.b16 %v275, %v274
    %v287 = vpack.c.b16 %v277, %v276
    %v288 = vpack.c.b16 %v279, %v278
    %v289 = vpack.c.b16 %v281, %v280
    %298 = vmatprep.subr.bf16.mxu0 0
    %299 = vmatpush1.bf16.msra.mxu0 %v282
    %300 = vmatprep.subr.bf16.mxu0 0
    %301 = vmatpush1.bf16.msra.mxu0 %v283
    %302 = vmatprep.subr.bf16.mxu0 0
    %303 = vmatpush1.bf16.msra.mxu0 %v284
    %304 = vmatprep.subr.bf16.mxu0 0
    %305 = vmatpush1.bf16.msra.mxu0 %v285
    %306 = vmatprep.subr.bf16.mxu0 0
    %307 = vmatpush1.bf16.msra.mxu0 %v286
    %308 = vmatprep.subr.bf16.mxu0 0
    %309 = vmatpush1.bf16.msra.mxu0 %v287
    %310 = vmatprep.subr.bf16.mxu0 0
    %311 = vmatpush1.bf16.msra.mxu0 %v288
    %312 = vmatprep.subr.bf16.mxu0 0
    %313 = vmatpush1.bf16.msra.mxu0 %v289
    %314 = vmatprep.subr.bf16.mxu0 0
    %315 = vmatpush1.bf16.msra.mxu0 0
    %316 = vmatprep.subr.bf16.mxu0 0
    %317 = vmatpush1.bf16.msra.mxu0 0
    %318 = vmatprep.subr.bf16.mxu0 0
    %319 = vmatpush1.bf16.msra.mxu0 0
    %320 = vmatprep.subr.bf16.mxu0 0
    %321 = vmatpush1.bf16.msra.mxu0 0
    %322 = vmatprep.subr.bf16.mxu0 0
    %323 = vmatpush1.bf16.msra.mxu0 0
    %324 = vmatprep.subr.bf16.mxu0 0
    %325 = vmatpush1.bf16.msra.mxu0 0
    %326 = vmatprep.subr.bf16.mxu0 0
    %327 = vmatpush1.bf16.msra.mxu0 0
    %328 = vmatprep.subr.bf16.mxu0 0
    %329 = vmatpush1.bf16.msra.mxu0 0
    %330 = vmatprep.mubr.bf16.mxu0 0
    %331 = vmatmul.mubr.bf16.gmra.mrb[0].mxu0 %v226
    %v332 = vpop.f32.mrb[0].mxu0
    %v333 = vadd.f32 %v248, %v332
    %v334 = vpop.f32.mrb[0].mxu0
    %v335 = vpop.f32.mrb[0].mxu0
    %v336 = vadd.f32 %v248, %v335
    %v337 = vpop.f32.mrb[0].mxu0
    %338 = vdwg.mxu0
    %339 = vst [vmem:[%s7] sm:$0xff] %v333
    %340 = vst [vmem:[%s7 + $0x8] sm:$0xff] %v336
    // Predicated region
    $region38: #{mlp_forward.1} parent=1 // pred_check
      _
    $region39: #{mlp_forward.1} parent=1 // pred_check_branch
      %342 = sbr.rel (0) target = $region41
    $region40: #{mlp_forward.1} parent=1 // pred_region
      _
    $region41: #{mlp_forward.1} parent=1 // pred_fallthru
      _
    // Predicated region
    $region42: #{mlp_forward.1} parent=1 // pred_check
      _
    $region43: #{mlp_forward.1} parent=1 // pred_check_branch
      %344 = sbr.rel (0) target = $region45
    $region44: #{mlp_forward.1} parent=1 // pred_region
      _
    $region45: #{mlp_forward.1} parent=1 // pred_fallthru
      _
    %345 = vsyncpa [#allocation3], 1
    %346 = vsyncpa [#allocation5], 1

</llo_original>
